<compile_context>
chip_gen: v7x
topology: tpu7x:2x2x1
jax: 0.10.0
libtpu: 0.0.40
codegen_flags: <defaults>
</compile_context>

<pallas_src>
import functools

import jax
import jax.numpy as jnp
from jax.experimental import pallas as pl
from jax.experimental.pallas import tpu as pltpu


def _round_up(x, m):
    return ((x + m - 1) // m) * m


# ----------------------------------------------------------------------------- kernel
def _actor_critic_kernel(x_ref, w1_ref, w2_ref, w3_ref, bias_ref, out_ref, *,
                         action_size):
    """Fused actor+critic MLP on one batch tile.

    x_ref   : (TB, S)      bf16
    w1_ref  : (S, 2H)      bf16  concat(actor_w1 | critic_w1)
    w2_ref  : (2H, 2H)     bf16  block-diag(actor_w2, critic_w2)
    w3_ref  : (2H, 128)    bf16  block-diag(actor_w3, critic_w3), zero-padded lanes
    bias_ref: (8, 128)     f32   row0 = b1_cat, row1 = b2_cat, row2 = b3_cat (padded)
    out_ref : (TB, 128)    f32   [:, :A] = tanh(actor) = mu, [:, A:A+V] = values
    """
    x = x_ref[...]                       # bf16
    two_h = w2_ref.shape[0]
    n_cols = out_ref.shape[1]            # 128 (lane-dense)

    b1 = bias_ref[0:1, 0:two_h]          # f32
    b2 = bias_ref[1:2, 0:two_h]
    b3 = bias_ref[2:3, 0:n_cols]

    # layer 1: (TB, S) @ (S, 2H) -- actor & critic first layers fused lane-wise.
    h = jnp.dot(x, w1_ref[...], preferred_element_type=jnp.float32) + b1
    h = jnp.maximum(h, 0.0)

    # layer 2: (TB, 2H) @ (2H, 2H) block-diagonal -- one full bf16 MXU tile.
    h = jnp.dot(h.astype(jnp.bfloat16), w2_ref[...],
                preferred_element_type=jnp.float32) + b2
    h = jnp.maximum(h, 0.0)

    # layer 3: (TB, 2H) @ (2H, 128) block-diagonal -> lane-dense output slab.
    o = jnp.dot(h.astype(jnp.bfloat16), w3_ref[...],
                preferred_element_type=jnp.float32) + b3

    # tanh only on the actor (mu) columns; critic / padding columns stay linear.
    cols = jax.lax.broadcasted_iota(jnp.int32, o.shape, dimension=1)
    o = jnp.where(cols < action_size, jnp.tanh(o), o)

    out_ref[...] = o.astype(out_ref.dtype)


# ----------------------------------------------------------------------------- wrapper
def actor_critic_forward(states, packed, *, tile_b=4096):
    """states: (B, state_size).  packed: output of pack_params().

    Returns (mu, std, values) with shapes (B, A), (B, A), (B, V).
    """
    B, S = states.shape
    A = packed["action_size"]
    V = packed["value_size"]
    w1, w2, w3, bias = packed["w1"], packed["w2"], packed["w3"], packed["bias"]
    two_h = w2.shape[0]
    out_w = w3.shape[1]                       # 128 (lane-padded A+V)

    # bf16 MXU operands (weights already bf16 from pack_params).
    x = states.astype(jnp.bfloat16)

    # --- batch tiling (tile must be a multiple of 16 for bf16 sublane packing).
    # For B > 16 force grid_b >= 2 so v7x's "parallel" axis uses both TensorCores.
    if B <= 16:
        tb = 16
    else:
        tb = min(tile_b, _round_up(pl.cdiv(B, 2), 16))
    grid_b = pl.cdiv(B, tb)
    b_pad = grid_b * tb
    if b_pad != B:
        x = jnp.pad(x, ((0, b_pad - B), (0, 0)))

    flops = 2 * b_pad * (S * two_h + two_h * two_h + two_h * out_w)
    bytes_accessed = (2 * b_pad * S                      # x (bf16)
                      + 4 * b_pad * out_w                # out (f32)
                      + 2 * (w1.size + w2.size + w3.size)  # weights (bf16)
                      + 4 * bias.size)                   # bias (f32)

    weight_spec = lambda shape: pl.BlockSpec(shape, lambda i: (0, 0),
                                             pipeline_mode=pl.Buffered(1))

    slab = pl.pallas_call(
        functools.partial(_actor_critic_kernel, action_size=A),
        out_shape=jax.ShapeDtypeStruct((b_pad, out_w), jnp.float32),
        grid=(grid_b,),
        in_specs=[
            pl.BlockSpec((tb, S), lambda i: (i, 0)),      # x: tiled over batch
            weight_spec(w1.shape),                        # weights stay VMEM-resident,
            weight_spec(w2.shape),                        # single-buffered
            weight_spec(w3.shape),
            weight_spec(bias.shape),
        ],
        out_specs=pl.BlockSpec((tb, out_w), lambda i: (i, 0)),
        compiler_params=pltpu.CompilerParams(
            dimension_semantics=("parallel",),            # v7x: shard batch across TCs
            vmem_limit_bytes=48 * 1024 * 1024,            # safe on v7x's 64 MiB VMEM
        ),
        cost_estimate=pl.CostEstimate(
            flops=flops,
            transcendentals=b_pad * out_w,
            bytes_accessed=bytes_accessed,
        ),
    )(x, w1, w2, w3, bias)

    mu = slab[:B, :A]
    values = slab[:B, A:A + V]
    # std is x-independent -> computed outside the kernel (no (B, A) writeback).
    std = jnp.broadcast_to(jnp.exp(packed["log_std"]), (B, A))
    return mu, std, values


# ----------------------------------------------------------------------------- params
def init_params(key, state_size, action_size, value_size=1, hidden_size=64, std=0.0):
    """Deterministic synthetic init (shapes mirror the PyTorch module).

    Weights stored as (in_features, out_features); biases as (1, out_features).
    """
    ks = jax.random.split(key, 12)

    def lin(kw, kb, fan_in, fan_out):
        bound = 1.0 / jnp.sqrt(fan_in)          # PyTorch nn.Linear default init
        w = jax.random.uniform(kw, (fan_in, fan_out), jnp.float32, -bound, bound)
        b = jax.random.uniform(kb, (1, fan_out), jnp.float32, -bound, bound)
        return w, b

    aw1, ab1 = lin(ks[0], ks[1], state_size, hidden_size)
    aw2, ab2 = lin(ks[2], ks[3], hidden_size, hidden_size)
    aw3, ab3 = lin(ks[4], ks[5], hidden_size, action_size)
    cw1, cb1 = lin(ks[6], ks[7], state_size, hidden_size)
    cw2, cb2 = lin(ks[8], ks[9], hidden_size, hidden_size)
    cw3, cb3 = lin(ks[10], ks[11], hidden_size, value_size)
    log_std = jnp.ones((1, action_size), jnp.float32) * std

    return dict(
        aw1=aw1, ab1=ab1, aw2=aw2, ab2=ab2, aw3=aw3, ab3=ab3,
        cw1=cw1, cb1=cb1, cw2=cw2, cb2=cb2, cw3=cw3, cb3=cb3,
        log_std=log_std,
    )


def pack_params(p):
    """One-time fusion of actor+critic parameters into the kernel layout."""
    S, H = p["aw1"].shape
    A = p["aw3"].shape[1]
    V = p["cw3"].shape[1]
    two_h = 2 * H
    n_out = A + V
    out_pad = max(128, _round_up(n_out, 128))      # lane-dense output width

    # layer 1: lane-concatenated weights (S, 2H)
    w1 = jnp.concatenate([p["aw1"], p["cw1"]], axis=1)

    # layer 2: block-diagonal (2H, 2H)
    w2 = jnp.zeros((two_h, two_h), jnp.float32)
    w2 = w2.at[:H, :H].set(p["aw2"]).at[H:, H:].set(p["cw2"])

    # layer 3: block-diagonal, lane-padded (2H, out_pad)
    w3 = jnp.zeros((two_h, out_pad), jnp.float32)
    w3 = w3.at[:H, :A].set(p["aw3"]).at[H:, A:n_out].set(p["cw3"])

    # biases packed into one (8, 128k) f32 slab: row0=b1, row1=b2, row2=b3
    width = _round_up(max(two_h, out_pad), 128)
    bias = jnp.zeros((8, width), jnp.float32)
    bias = bias.at[0, :two_h].set(jnp.concatenate([p["ab1"][0], p["cb1"][0]]))
    bias = bias.at[1, :two_h].set(jnp.concatenate([p["ab2"][0], p["cb2"][0]]))
    bias = bias.at[2, :n_out].set(jnp.concatenate([p["ab3"][0], p["cb3"][0]]))

    # MXU operands in bf16 (single-pass matmul); biases stay f32 for VPU work.
    return dict(w1=w1.astype(jnp.bfloat16),
                w2=w2.astype(jnp.bfloat16),
                w3=w3.astype(jnp.bfloat16),
                bias=bias, log_std=p["log_std"],
                action_size=A, value_size=V)


# ----------------------------------------------------------------------------- reference
def reference_forward(states, p):
    """Pure-JAX f32 reference of the PyTorch forward (returns mu, std, values)."""
    h = jax.nn.relu(states @ p["aw1"] + p["ab1"])
    h = jax.nn.relu(h @ p["aw2"] + p["ab2"])
    mu = jnp.tanh(h @ p["aw3"] + p["ab3"])
    std = jnp.exp(p["log_std"]) * jnp.ones_like(mu)
    c = jax.nn.relu(states @ p["cw1"] + p["cb1"])
    c = jax.nn.relu(c @ p["cw2"] + p["cb2"])
    values = c @ p["cw3"] + p["cb3"]
    return mu, std, values


# ----------------------------------------------------------------------------- main
if __name__ == "__main__":
    key = jax.random.PRNGKey(0)
    k_param, k_state = jax.random.split(key)

    batch = 2
    state_size = 8
    action_size = 4
    value_size = 1
    hidden_size = 64

    raw = init_params(k_param, state_size, action_size, value_size, hidden_size, std=0.0)
    packed = pack_params(raw)
    states = jax.random.normal(k_state, (batch, state_size), jnp.float32)

    mu, std, values = jax.block_until_ready(actor_critic_forward(states, packed))

    # Sanity check against the pure-JAX f32 reference (bf16 MXU -> looser tolerance).
    mu_r, std_r, val_r = reference_forward(states, raw)
    assert mu.shape == (batch, action_size)
    assert std.shape == (batch, action_size)
    assert values.shape == (batch, value_size)
    assert jnp.allclose(mu, mu_r, atol=2e-2), "mu mismatch"
    assert jnp.allclose(std, std_r, atol=1e-6), "std mismatch"
    assert jnp.allclose(values, val_r, atol=2e-2), "values mismatch"

    # TODO(synk): torch.distributions.Normal has no Pallas equivalent; (mu, std)
    # fully parameterize the returned distribution.
    print("KERNEL_OK")
</pallas_src>

<mosaic_0001>
module attributes {stable_mosaic.version = 11 : i64} {
  func.func @_actor_critic_kernel(%arg0: i32, %arg1: memref<16x8xbf16, #tpu.memory_space<vmem>>, %arg2: memref<8x128xbf16, #tpu.memory_space<vmem>>, %arg3: memref<128x128xbf16, #tpu.memory_space<vmem>>, %arg4: memref<128x128xbf16, #tpu.memory_space<vmem>>, %arg5: memref<8x128xf32, #tpu.memory_space<vmem>>, %arg6: memref<16x128xf32, #tpu.memory_space<vmem>>) attributes {dimension_semantics = [#tpu.dimension_semantics<parallel>], iteration_bounds = array<i64: 1>, scalar_prefetch = 0 : i64, scratch_operands = 0 : i64, tpu.core_type = #tpu.core_type<tc>, window_params = [{transform_indices = @transform_0, window_bounds = array<i64: 16, 8>}, {pipeline_mode = #tpu.pipeline_mode<synchronous>, transform_indices = @transform_1, window_bounds = array<i64: 8, 128>}, {pipeline_mode = #tpu.pipeline_mode<synchronous>, transform_indices = @transform_2, window_bounds = array<i64: 128, 128>}, {pipeline_mode = #tpu.pipeline_mode<synchronous>, transform_indices = @transform_3, window_bounds = array<i64: 128, 128>}, {pipeline_mode = #tpu.pipeline_mode<synchronous>, transform_indices = @transform_4, window_bounds = array<i64: 8, 128>}, {transform_indices = @transform_5, window_bounds = array<i64: 16, 128>}]} {
    %c0 = arith.constant 0 : index
    %c0_0 = arith.constant 0 : index
    %0 = vector.load %arg1[%c0, %c0_0] : memref<16x8xbf16, #tpu.memory_space<vmem>>, vector<16x8xbf16>
    %c0_1 = arith.constant 0 : index
    %c0_2 = arith.constant 0 : index
    %1 = vector.load %arg5[%c0_1, %c0_2] : memref<8x128xf32, #tpu.memory_space<vmem>>, vector<1x128xf32>
    %c1 = arith.constant 1 : index
    %c0_3 = arith.constant 0 : index
    %2 = vector.load %arg5[%c1, %c0_3] : memref<8x128xf32, #tpu.memory_space<vmem>>, vector<1x128xf32>
    %c2 = arith.constant 2 : index
    %c0_4 = arith.constant 0 : index
    %3 = vector.load %arg5[%c2, %c0_4] : memref<8x128xf32, #tpu.memory_space<vmem>>, vector<1x128xf32>
    %c0_5 = arith.constant 0 : index
    %c0_6 = arith.constant 0 : index
    %4 = vector.load %arg2[%c0_5, %c0_6] : memref<8x128xbf16, #tpu.memory_space<vmem>>, vector<8x128xbf16>
    %cst = arith.constant dense<0.000000e+00> : vector<16x128xf32>
    %5 = tpu.matmul %0, %4, %cst {dimension_numbers = #tpu.dot_dimension_numbers<[1], [0], [0], [1], [0, 0, 1, 1], [], []>} : vector<16x8xbf16>, vector<8x128xbf16>, vector<16x128xf32> -> vector<16x128xf32>
    %6 = vector.broadcast %1 : vector<1x128xf32> to vector<16x128xf32>
    %7 = arith.addf %5, %6 : vector<16x128xf32>
    %cst_7 = arith.constant 0.000000e+00 : f32
    %8 = vector.broadcast %cst_7 : f32 to vector<16x128xf32>
    %9 = arith.maximumf %7, %8 : vector<16x128xf32>
    %10 = arith.truncf %9 : vector<16x128xf32> to vector<16x128xbf16>
    %c0_8 = arith.constant 0 : index
    %c0_9 = arith.constant 0 : index
    %11 = vector.load %arg3[%c0_8, %c0_9] : memref<128x128xbf16, #tpu.memory_space<vmem>>, vector<128x128xbf16>
    %cst_10 = arith.constant dense<0.000000e+00> : vector<16x128xf32>
    %12 = tpu.matmul %10, %11, %cst_10 {dimension_numbers = #tpu.dot_dimension_numbers<[1], [0], [0], [1], [0, 0, 1, 1], [], []>} : vector<16x128xbf16>, vector<128x128xbf16>, vector<16x128xf32> -> vector<16x128xf32>
    %13 = vector.broadcast %2 : vector<1x128xf32> to vector<16x128xf32>
    %14 = arith.addf %12, %13 : vector<16x128xf32>
    %cst_11 = arith.constant 0.000000e+00 : f32
    %15 = vector.broadcast %cst_11 : f32 to vector<16x128xf32>
    %16 = arith.maximumf %14, %15 : vector<16x128xf32>
    %17 = arith.truncf %16 : vector<16x128xf32> to vector<16x128xbf16>
    %c0_12 = arith.constant 0 : index
    %c0_13 = arith.constant 0 : index
    %18 = vector.load %arg4[%c0_12, %c0_13] : memref<128x128xbf16, #tpu.memory_space<vmem>>, vector<128x128xbf16>
    %cst_14 = arith.constant dense<0.000000e+00> : vector<16x128xf32>
    %19 = tpu.matmul %17, %18, %cst_14 {dimension_numbers = #tpu.dot_dimension_numbers<[1], [0], [0], [1], [0, 0, 1, 1], [], []>} : vector<16x128xbf16>, vector<128x128xbf16>, vector<16x128xf32> -> vector<16x128xf32>
    %20 = vector.broadcast %3 : vector<1x128xf32> to vector<16x128xf32>
    %21 = arith.addf %19, %20 : vector<16x128xf32>
    %22 = tpu.iota {dimensions = array<i32: 1>} : vector<16x128xi32>
    %c4_i32 = arith.constant 4 : i32
    %23 = vector.broadcast %c4_i32 : i32 to vector<16x128xi32>
    %24 = arith.cmpi slt, %22, %23 : vector<16x128xi32>
    %25 = math.tanh %21 : vector<16x128xf32>
    %26 = arith.select %24, %25, %21 : vector<16x128xi1>, vector<16x128xf32>
    %c0_15 = arith.constant 0 : index
    %c0_16 = arith.constant 0 : index
    %27 = vector.load %arg6[%c0_15, %c0_16] : memref<16x128xf32, #tpu.memory_space<vmem>>, vector<16x128xf32>
    tpu.vector_store %arg6[%c0_15, %c0_16], %26 {strides = array<i32>} : memref<16x128xf32, #tpu.memory_space<vmem>>, vector<16x128xf32>,
    return
  }
  func.func @transform_0(%arg0: i32) -> (i32, i32) {
    %c0_i32 = arith.constant 0 : i32
    %c0_i32_0 = arith.constant 0 : i32
    return %arg0, %c0_i32 : i32, i32
  }
  func.func @transform_1(%arg0: i32) -> (i32, i32) {
    %c0_i32 = arith.constant 0 : i32
    %c0_i32_0 = arith.constant 0 : i32
    %c0_i32_1 = arith.constant 0 : i32
    return %c0_i32, %c0_i32_0 : i32, i32
  }
  func.func @transform_2(%arg0: i32) -> (i32, i32) {
    %c0_i32 = arith.constant 0 : i32
    %c0_i32_0 = arith.constant 0 : i32
    %c0_i32_1 = arith.constant 0 : i32
    return %c0_i32, %c0_i32_0 : i32, i32
  }
  func.func @transform_3(%arg0: i32) -> (i32, i32) {
    %c0_i32 = arith.constant 0 : i32
    %c0_i32_0 = arith.constant 0 : i32
    %c0_i32_1 = arith.constant 0 : i32
    return %c0_i32, %c0_i32_0 : i32, i32
  }
  func.func @transform_4(%arg0: i32) -> (i32, i32) {
    %c0_i32 = arith.constant 0 : i32
    %c0_i32_0 = arith.constant 0 : i32
    %c0_i32_1 = arith.constant 0 : i32
    return %c0_i32, %c0_i32_0 : i32, i32
  }
  func.func @transform_5(%arg0: i32) -> (i32, i32) {
    %c0_i32 = arith.constant 0 : i32
    %c0_i32_0 = arith.constant 0 : i32
    return %arg0, %c0_i32 : i32, i32
  }
}

</mosaic_0001>

<llo_original>
// kernel: tpu_custom_call.1
$region0: #{tpu_custom_call.1}
  #allocation0 [shape = 'u32[]', space=smem, size = 0x4, offset = 0x4, fixed_abs, tag = 'smem constant byte address 0x4 - core index']
  #allocation1 [shape = 'u32[144,128]{1,0:T(1,128)}', space=vmem, size = 0x12000, scoped, tag = 'internal scratch']
  %s0 = inlined_call_operand.vmem [shape: bf16[16,8], index: 0, kind: input, shape index: {}]
  %s1 = inlined_call_operand.vmem [shape: bf16[8,128], index: 1, kind: input, shape index: {}]
  %s2 = inlined_call_operand.hbm [shape: bf16[128,128], index: 2, kind: input, shape index: {}]
  %s3 = inlined_call_operand.hbm [shape: bf16[128,128], index: 3, kind: input, shape index: {}]
  %s4 = inlined_call_operand.vmem [shape: f32[8,128], index: 4, kind: input, shape index: {}]
  %s5 = inlined_call_operand.hbm [shape: f32[16,128], index: 5, kind: output, shape index: {}]
  %s6 = sld [smem:[#allocation0]]
  $region38: #{tpu_custom_call.1} parent=0
    _
  %s8 = ssub.s32 1, %s6
  %s9 = scalar_select 0, %s8, %s6
  $region1: #{tpu_custom_call.1} parent=0
    #allocation2 [shape = 'u8[32768]{0}', space=vmem, size = 0x8000, scoped, tag = 'input window, operand 2, single buffered']
    #allocation3 [shape = 's32[1]{0}', space=sflag, size = 0x4, scoped, tag = 'scoped memory for tpu_custom_call.1']
    #allocation4 [shape = 's32[1]{0}', space=sflag, size = 0x4, scoped, tag = 'scoped memory for tpu_custom_call.1']
    #allocation5 [shape = 'u8[32768]{0}', space=vmem, size = 0x8000, scoped, tag = 'input window, operand 3, single buffered']
    #allocation6 [shape = 's32[1]{0}', space=sflag, size = 0x4, scoped, tag = 'scoped memory for tpu_custom_call.1']
    #allocation7 [shape = 'u8[8192]{0}', space=vmem, size = 0x2000, scoped, tag = 'output window, operand 0, single buffered']
    %10 = vsyncpa [#allocation3], 0
    %11 = vsyncpa [#allocation6], 0
    %12 = vsyncpa [#allocation4], 0
    // Predicated region
    $region2: #{tpu_custom_call.1} parent=1 // pred_check
      _
    $region3: #{tpu_custom_call.1} parent=1 // pred_check_branch
      %14 = sbr.rel (0) target = $region5
    $region4: #{tpu_custom_call.1} parent=1 // pred_region
      _
    $region5: #{tpu_custom_call.1} parent=1 // pred_fallthru
      _
    // Predicated region
    $region6: #{tpu_custom_call.1} parent=1 // pred_check
      _
    $region7: #{tpu_custom_call.1} parent=1 // pred_check_branch
      %16 = sbr.rel (0) target = $region9
    $region8: #{tpu_custom_call.1} parent=1 // pred_region
      _
    $region9: #{tpu_custom_call.1} parent=1 // pred_fallthru
      _
    // Predicated region
    $region10: #{tpu_custom_call.1} parent=1 // pred_check
      _
    $region11: #{tpu_custom_call.1} parent=1 // pred_check_branch
      %18 = sbr.rel (0) target = $region13
    $region12: #{tpu_custom_call.1} parent=1 // pred_region
      %s20 = ssub.s32 1024, 1024
      %21 = vsyncadd [#allocation3], %s20
      %s22 = sshll.u32 [#allocation2], 4
      %s23 = int_to_ptr.vmem [resolvable:$true] %s22
      %28 = dma.hbm_to_vmem [thread:$0]  %s2, 1024, %s23, [#allocation3], 64, 64, 4
    $region13: #{tpu_custom_call.1} parent=1 // pred_fallthru
      _
    // Predicated region
    $region14: #{tpu_custom_call.1} parent=1 // pred_check
      _
    $region15: #{tpu_custom_call.1} parent=1 // pred_check_branch
      %30 = sbr.rel (0) target = $region17
    $region16: #{tpu_custom_call.1} parent=1 // pred_region
      %s32 = ssub.s32 1024, 1024
      %33 = vsyncadd [#allocation6], %s32
      %s34 = sshll.u32 [#allocation5], 4
      %s35 = int_to_ptr.vmem [resolvable:$true] %s34
      %40 = dma.hbm_to_vmem [thread:$0]  %s3, 1024, %s35, [#allocation6], 64, 64, 4
    $region17: #{tpu_custom_call.1} parent=1 // pred_fallthru
      _
    // Predicated region
    $region18: #{tpu_custom_call.1} parent=1 // pred_check
      _
    $region19: #{tpu_custom_call.1} parent=1 // pred_check_branch
      %42 = sbr.rel (0) target = $region21
    $region20: #{tpu_custom_call.1} parent=1 // pred_region
      _
    $region21: #{tpu_custom_call.1} parent=1 // pred_fallthru
      _
    // Predicated region
    $region22: #{tpu_custom_call.1} parent=1 // pred_check
      _
    $region23: #{tpu_custom_call.1} parent=1 // pred_check_branch
      %44 = sbr.rel (0) target = $region25
    $region24: #{tpu_custom_call.1} parent=1 // pred_region
      %45 = dma.done [#allocation3], 1024
    $region25: #{tpu_custom_call.1} parent=1 // pred_fallthru
      _
    // Predicated region
    $region26: #{tpu_custom_call.1} parent=1 // pred_check
      _
    $region27: #{tpu_custom_call.1} parent=1 // pred_check_branch
      %47 = sbr.rel (0) target = $region29
    $region28: #{tpu_custom_call.1} parent=1 // pred_region
      %48 = dma.done [#allocation6], 1024
    $region29: #{tpu_custom_call.1} parent=1 // pred_fallthru
      _
    %v50 = vld [vmem:[%s0] sm:$0xf]
    %v51 = vld [vmem:[%s0 + $0x4] sm:$0xf]
    %v52 = vld [vmem:[%s4] sm:$0x1]
    %v53 = vld [vmem:[%s4 + $0x1] sm:$0x1]
    %v54 = vld [vmem:[%s4 + $0x2] sm:$0x1]
    %v55 = vld [vmem:[%s1] sm:$0xf]
    %v56 = vlaneseq
    %v57 = vshrl.u32 %v56, 7
    %v58 = vsub.s32 0, %v57
    %v59 = vrot.slane %v52, %v58
    %v62 = vunpack.c.l.b16 %v50
    %v63 = vunpack.c.l.b16 %v51
    %v64 = vpack.c.b16 %v63, %v62
    %vm65 = vcmask 64512
    %v67 = vsel %vm65, %v64, 0
    %vm69 = vcmask 1043456
    %v71 = vsel %vm69, %v55, 0
    %73 = vmatprep.subr.bf16.mxu0 0
    %74 = vmatpush1.bf16.msra.mxu0 %v71
    %75 = vmatprep.subr.bf16.mxu0 0
    %76 = vmatpush1.bf16.msra.mxu0 0
    %77 = vmatprep.subr.bf16.mxu0 0
    %78 = vmatpush1.bf16.msra.mxu0 0
    %79 = vmatprep.subr.bf16.mxu0 0
    %80 = vmatpush1.bf16.msra.mxu0 0
    %81 = vmatprep.subr.bf16.mxu0 0
    %82 = vmatpush1.bf16.msra.mxu0 0
    %83 = vmatprep.subr.bf16.mxu0 0
    %84 = vmatpush1.bf16.msra.mxu0 0
    %85 = vmatprep.subr.bf16.mxu0 0
    %86 = vmatpush1.bf16.msra.mxu0 0
    %87 = vmatprep.subr.bf16.mxu0 0
    %88 = vmatpush1.bf16.msra.mxu0 0
    %89 = vmatprep.subr.bf16.mxu0 0
    %90 = vmatpush1.bf16.msra.mxu0 0
    %91 = vmatprep.subr.bf16.mxu0 0
    %92 = vmatpush1.bf16.msra.mxu0 0
    %93 = vmatprep.subr.bf16.mxu0 0
    %94 = vmatpush1.bf16.msra.mxu0 0
    %95 = vmatprep.subr.bf16.mxu0 0
    %96 = vmatpush1.bf16.msra.mxu0 0
    %97 = vmatprep.subr.bf16.mxu0 0
    %98 = vmatpush1.bf16.msra.mxu0 0
    %99 = vmatprep.subr.bf16.mxu0 0
    %100 = vmatpush1.bf16.msra.mxu0 0
    %101 = vmatprep.subr.bf16.mxu0 0
    %102 = vmatpush1.bf16.msra.mxu0 0
    %103 = vmatprep.subr.bf16.mxu0 0
    %104 = vmatpush1.bf16.msra.mxu0 0
    %105 = vmatprep.mubr.bf16.mxu0 0
    %106 = vmatmul.mubr.bf16.gmra.mrb[0].mxu0 %v67
    %v107 = vpop.f32.mrb[0].mxu0
    %v108 = vadd.f32 %v59, %v107
    %v109 = vpop.f32.mrb[0].mxu0
    %v110 = vpop.f32.mrb[0].mxu0
    %v111 = vadd.f32 %v59, %v110
    %v112 = vpop.f32.mrb[0].mxu0
    %113 = vdwg.mxu0
    %v114 = vmax.f32 %v108, 0.0
    %v115 = vmax.f32 %v111, 0.0
    %v116 = vpack.c.bf16 %v115, %v114
    %v117 = vld [vmem:[#allocation2] sm:$0xf]
    %v118 = vld [vmem:[#allocation2 + $0x4] sm:$0xf]
    %v119 = vld [vmem:[#allocation2 + $0x8] sm:$0xf]
    %v120 = vld [vmem:[#allocation2 + $0xc] sm:$0xf]
    %v121 = vld [vmem:[#allocation2 + $0x10] sm:$0xf]
    %v122 = vld [vmem:[#allocation2 + $0x14] sm:$0xf]
    %v123 = vld [vmem:[#allocation2 + $0x18] sm:$0xf]
    %v124 = vld [vmem:[#allocation2 + $0x1c] sm:$0xf]
    %v125 = vld [vmem:[#allocation2 + $0x20] sm:$0xf]
    %v126 = vld [vmem:[#allocation2 + $0x24] sm:$0xf]
    %v127 = vld [vmem:[#allocation2 + $0x28] sm:$0xf]
    %v128 = vld [vmem:[#allocation2 + $0x2c] sm:$0xf]
    %v129 = vld [vmem:[#allocation2 + $0x30] sm:$0xf]
    %v130 = vld [vmem:[#allocation2 + $0x34] sm:$0xf]
    %v131 = vld [vmem:[#allocation2 + $0x38] sm:$0xf]
    %v132 = vld [vmem:[#allocation2 + $0x3c] sm:$0xf]
    %v133 = vlaneseq
    %v134 = vshrl.u32 %v133, 7
    %v135 = vsub.s32 0, %v134
    %v136 = vrot.slane %v53, %v135
    %v153 = vunpack.c.l.b16 %v117
    %v154 = vunpack.c.l.b16 %v118
    %v155 = vunpack.c.l.b16 %v119
    %v156 = vunpack.c.l.b16 %v120
    %v157 = vunpack.c.l.b16 %v121
    %v158 = vunpack.c.l.b16 %v122
    %v159 = vunpack.c.l.b16 %v123
    %v160 = vunpack.c.l.b16 %v124
    %v161 = vunpack.c.l.b16 %v125
    %v162 = vunpack.c.l.b16 %v126
    %v163 = vunpack.c.l.b16 %v127
    %v164 = vunpack.c.l.b16 %v128
    %v165 = vunpack.c.l.b16 %v129
    %v166 = vunpack.c.l.b16 %v130
    %v167 = vunpack.c.l.b16 %v131
    %v168 = vunpack.c.l.b16 %v132
    %v169 = vpack.c.b16 %v154, %v153
    %v170 = vpack.c.b16 %v156, %v155
    %v171 = vpack.c.b16 %v158, %v157
    %v172 = vpack.c.b16 %v160, %v159
    %v173 = vpack.c.b16 %v162, %v161
    %v174 = vpack.c.b16 %v164, %v163
    %v175 = vpack.c.b16 %v166, %v165
    %v176 = vpack.c.b16 %v168, %v167
    %185 = vmatprep.subr.bf16.mxu0 0
    %186 = vmatpush1.bf16.msra.mxu0 %v169
    %187 = vmatprep.subr.bf16.mxu0 0
    %188 = vmatpush1.bf16.msra.mxu0 %v170
    %189 = vmatprep.subr.bf16.mxu0 0
    %190 = vmatpush1.bf16.msra.mxu0 %v171
    %191 = vmatprep.subr.bf16.mxu0 0
    %192 = vmatpush1.bf16.msra.mxu0 %v172
    %193 = vmatprep.subr.bf16.mxu0 0
    %194 = vmatpush1.bf16.msra.mxu0 %v173
    %195 = vmatprep.subr.bf16.mxu0 0
    %196 = vmatpush1.bf16.msra.mxu0 %v174
    %197 = vmatprep.subr.bf16.mxu0 0
    %198 = vmatpush1.bf16.msra.mxu0 %v175
    %199 = vmatprep.subr.bf16.mxu0 0
    %200 = vmatpush1.bf16.msra.mxu0 %v176
    %201 = vmatprep.subr.bf16.mxu0 0
    %202 = vmatpush1.bf16.msra.mxu0 0
    %203 = vmatprep.subr.bf16.mxu0 0
    %204 = vmatpush1.bf16.msra.mxu0 0
    %205 = vmatprep.subr.bf16.mxu0 0
    %206 = vmatpush1.bf16.msra.mxu0 0
    %207 = vmatprep.subr.bf16.mxu0 0
    %208 = vmatpush1.bf16.msra.mxu0 0
    %209 = vmatprep.subr.bf16.mxu0 0
    %210 = vmatpush1.bf16.msra.mxu0 0
    %211 = vmatprep.subr.bf16.mxu0 0
    %212 = vmatpush1.bf16.msra.mxu0 0
    %213 = vmatprep.subr.bf16.mxu0 0
    %214 = vmatpush1.bf16.msra.mxu0 0
    %215 = vmatprep.subr.bf16.mxu0 0
    %216 = vmatpush1.bf16.msra.mxu0 0
    %217 = vmatprep.mubr.bf16.mxu0 0
    %218 = vmatmul.mubr.bf16.gmra.mrb[0].mxu0 %v116
    %v219 = vpop.f32.mrb[0].mxu0
    %v220 = vadd.f32 %v136, %v219
    %v221 = vpop.f32.mrb[0].mxu0
    %v222 = vpop.f32.mrb[0].mxu0
    %v223 = vadd.f32 %v136, %v222
    %v224 = vpop.f32.mrb[0].mxu0
    %225 = vdwg.mxu0
    %v226 = vmax.f32 %v220, 0.0
    %v227 = vmax.f32 %v223, 0.0
    %v228 = vpack.c.bf16 %v227, %v226
    %v229 = vld [vmem:[#allocation5] sm:$0xf]
    %v230 = vld [vmem:[#allocation5 + $0x4] sm:$0xf]
    %v231 = vld [vmem:[#allocation5 + $0x8] sm:$0xf]
    %v232 = vld [vmem:[#allocation5 + $0xc] sm:$0xf]
    %v233 = vld [vmem:[#allocation5 + $0x10] sm:$0xf]
    %v234 = vld [vmem:[#allocation5 + $0x14] sm:$0xf]
    %v235 = vld [vmem:[#allocation5 + $0x18] sm:$0xf]
    %v236 = vld [vmem:[#allocation5 + $0x1c] sm:$0xf]
    %v237 = vld [vmem:[#allocation5 + $0x20] sm:$0xf]
    %v238 = vld [vmem:[#allocation5 + $0x24] sm:$0xf]
    %v239 = vld [vmem:[#allocation5 + $0x28] sm:$0xf]
    %v240 = vld [vmem:[#allocation5 + $0x2c] sm:$0xf]
    %v241 = vld [vmem:[#allocation5 + $0x30] sm:$0xf]
    %v242 = vld [vmem:[#allocation5 + $0x34] sm:$0xf]
    %v243 = vld [vmem:[#allocation5 + $0x38] sm:$0xf]
    %v244 = vld [vmem:[#allocation5 + $0x3c] sm:$0xf]
    %v245 = vlaneseq
    %v246 = vshrl.u32 %v245, 7
    %v247 = vsub.s32 0, %v246
    %v248 = vrot.slane %v54, %v247
    %v265 = vunpack.c.l.b16 %v229
    %v266 = vunpack.c.l.b16 %v230
    %v267 = vunpack.c.l.b16 %v231
    %v268 = vunpack.c.l.b16 %v232
    %v269 = vunpack.c.l.b16 %v233
    %v270 = vunpack.c.l.b16 %v234
    %v271 = vunpack.c.l.b16 %v235
    %v272 = vunpack.c.l.b16 %v236
    %v273 = vunpack.c.l.b16 %v237
    %v274 = vunpack.c.l.b16 %v238
    %v275 = vunpack.c.l.b16 %v239
    %v276 = vunpack.c.l.b16 %v240
    %v277 = vunpack.c.l.b16 %v241
    %v278 = vunpack.c.l.b16 %v242
    %v279 = vunpack.c.l.b16 %v243
    %v280 = vunpack.c.l.b16 %v244
    %v281 = vpack.c.b16 %v266, %v265
    %v282 = vpack.c.b16 %v268, %v267
    %v283 = vpack.c.b16 %v270, %v269
    %v284 = vpack.c.b16 %v272, %v271
    %v285 = vpack.c.b16 %v274, %v273
    %v286 = vpack.c.b16 %v276, %v275
    %v287 = vpack.c.b16 %v278, %v277
    %v288 = vpack.c.b16 %v280, %v279
    %297 = vmatprep.subr.bf16.mxu0 0
    %298 = vmatpush1.bf16.msra.mxu0 %v281
    %299 = vmatprep.subr.bf16.mxu0 0
    %300 = vmatpush1.bf16.msra.mxu0 %v282
    %301 = vmatprep.subr.bf16.mxu0 0
    %302 = vmatpush1.bf16.msra.mxu0 %v283
    %303 = vmatprep.subr.bf16.mxu0 0
    %304 = vmatpush1.bf16.msra.mxu0 %v284
    %305 = vmatprep.subr.bf16.mxu0 0
    %306 = vmatpush1.bf16.msra.mxu0 %v285
    %307 = vmatprep.subr.bf16.mxu0 0
    %308 = vmatpush1.bf16.msra.mxu0 %v286
    %309 = vmatprep.subr.bf16.mxu0 0
    %310 = vmatpush1.bf16.msra.mxu0 %v287
    %311 = vmatprep.subr.bf16.mxu0 0
    %312 = vmatpush1.bf16.msra.mxu0 %v288
    %313 = vmatprep.subr.bf16.mxu0 0
    %314 = vmatpush1.bf16.msra.mxu0 0
    %315 = vmatprep.subr.bf16.mxu0 0
    %316 = vmatpush1.bf16.msra.mxu0 0
    %317 = vmatprep.subr.bf16.mxu0 0
    %318 = vmatpush1.bf16.msra.mxu0 0
    %319 = vmatprep.subr.bf16.mxu0 0
    %320 = vmatpush1.bf16.msra.mxu0 0
    %321 = vmatprep.subr.bf16.mxu0 0
    %322 = vmatpush1.bf16.msra.mxu0 0
    %323 = vmatprep.subr.bf16.mxu0 0
    %324 = vmatpush1.bf16.msra.mxu0 0
    %325 = vmatprep.subr.bf16.mxu0 0
    %326 = vmatpush1.bf16.msra.mxu0 0
    %327 = vmatprep.subr.bf16.mxu0 0
    %328 = vmatpush1.bf16.msra.mxu0 0
    %329 = vmatprep.mubr.bf16.mxu0 0
    %330 = vmatmul.mubr.bf16.gmra.mrb[0].mxu0 %v228
    %v331 = vpop.f32.mrb[0].mxu0
    %v332 = vadd.f32 %v248, %v331
    %v333 = vpop.f32.mrb[0].mxu0
    %v334 = vpop.f32.mrb[0].mxu0
    %v335 = vadd.f32 %v248, %v334
    %v336 = vpop.f32.mrb[0].mxu0
    %337 = vdwg.mxu0
    %v338 = vlaneseq
    %v339 = vand.u32 %v338, 127
    %vm340 = vcmp.lt.s32.totalorder %v339, 4
    %v341 = vtanh.pop %v332
    %v342 = vtanh.pop %v335
    %v343 = vsel %vm340, %v341, %v332
    %v344 = vsel %vm340, %v342, %v335
    %345 = vst [vmem:[#allocation7] sm:$0xff] %v343
    %346 = vst [vmem:[#allocation7 + $0x8] sm:$0xff] %v344
    // Predicated region
    $region30: #{tpu_custom_call.1} parent=1 // pred_check
      _
    $region31: #{tpu_custom_call.1} parent=1 // pred_check_branch
      %348 = sbr.rel (0) target = $region33
    $region32: #{tpu_custom_call.1} parent=1 // pred_region
      %s350 = ssub.s32 256, 256
      %351 = vsyncadd [#allocation4], %s350
      %s352 = sshll.u32 [#allocation7], 4
      %s353 = int_to_ptr.vmem [resolvable:$true] %s352
      %358 = dma.vmem_to_hbm [thread:$0]  %s353, 256, %s5, [#allocation4], 128, 128, 8
    $region33: #{tpu_custom_call.1} parent=1 // pred_fallthru
      _
    // Predicated region
    $region34: #{tpu_custom_call.1} parent=1 // pred_check
      _
    $region35: #{tpu_custom_call.1} parent=1 // pred_check_branch
      %360 = sbr.rel (0) target = $region37
    $region36: #{tpu_custom_call.1} parent=1 // pred_region
      %361 = dma.done [#allocation4], 256
    $region37: #{tpu_custom_call.1} parent=1 // pred_fallthru
      _
    %362 = vsyncpa [#allocation3], 1
    %363 = vsyncpa [#allocation6], 1
    %364 = vsyncpa [#allocation4], 1

</llo_original>
